<compile_context>
chip_gen: v5e
topology: v5e:2x2
jax: 0.10.0
libtpu: 0.0.40
codegen_flags: <defaults>
</compile_context>

<pallas_src>
import jax
import jax.numpy as jnp
from jax.experimental import pallas as pl
from jax.experimental.pallas import tpu as pltpu

LANE = 128        # vreg lane width
TILE_ROWS = 512   # (512, 128) f32 tiles ~= 85% of HBM roofline for elementwise


def _linear_kernel(x_ref, wb_ref, o_ref):
    # x_ref : lane-dense f32 tile in VMEM
    # wb_ref: f32[2] in SMEM  -> wb_ref[0] = weight, wb_ref[1] = bias
    # o_ref : same shape as x_ref, VMEM
    # Pure VPU multiply-add (2 VALU ops per vreg); no MXU involvement.
    o_ref[...] = x_ref[...] * wb_ref[0] + wb_ref[1]


def make_linear_1x1(M):
    """Builds jitted y = x @ W^T + b for nn.Linear(1, 1); x has shape (M, 1)."""
    chunk = TILE_ROWS * LANE
    use_grid = (M % chunk == 0) and (M >= chunk)
    # TODO(synk): ragged large M (not a multiple of 512*128) still takes the
    # gridless whole-array-resident path; add an overhanging tail tile if
    # such sizes ever matter.

    if use_grid:
        rows = M // LANE
        flat_shape = (rows, LANE)
        call = pl.pallas_call(
            _linear_kernel,
            out_shape=jax.ShapeDtypeStruct(flat_shape, jnp.float32),
            grid=(rows // TILE_ROWS,),
            in_specs=[
                pl.BlockSpec((TILE_ROWS, LANE), lambda i: (i, 0)),
                pl.BlockSpec(memory_space=pltpu.MemorySpace.SMEM),
            ],
            out_specs=pl.BlockSpec((TILE_ROWS, LANE), lambda i: (i, 0)),
            compiler_params=pltpu.CompilerParams(
                dimension_semantics=("parallel",),
                vmem_limit_bytes=32 * 1024 * 1024,
            ),
        )
    else:
        # Tiny / small M: gridless, whole (1, M) lane-dense slab resident in VMEM.
        flat_shape = (1, M)
        call = pl.pallas_call(
            _linear_kernel,
            out_shape=jax.ShapeDtypeStruct(flat_shape, jnp.float32),
            in_specs=[
                pl.BlockSpec(memory_space=pltpu.MemorySpace.VMEM),
                pl.BlockSpec(memory_space=pltpu.MemorySpace.SMEM),
            ],
            out_specs=pl.BlockSpec(memory_space=pltpu.MemorySpace.VMEM),
        )

    @jax.jit
    def linear_pallas(x, weight, bias):
        # x: (M, 1); weight: (1, 1) (PyTorch (out, in) layout); bias: (1,)
        x_flat = x.astype(jnp.float32).reshape(flat_shape)  # contiguous -> free
        wb = jnp.concatenate(
            [weight.astype(jnp.float32).reshape(-1),
             bias.astype(jnp.float32).reshape(-1)])          # f32[2] for SMEM
        out_flat = call(x_flat, wb)
        return out_flat.reshape(M, 1)

    return linear_pallas


if __name__ == "__main__":
    key = jax.random.PRNGKey(0)
    k_w, k_b = jax.random.split(key)

    # nn.Linear(1, 1) parameters: weight (1, 1), bias (1,).
    weight = jax.random.uniform(k_w, (1, 1), jnp.float32, minval=-1.0, maxval=1.0)
    bias = jax.random.uniform(k_b, (1,), jnp.float32, minval=-1.0, maxval=1.0)

    # Spec input: x = torch.tensor([[1.0], [2.0], [3.0]])
    x = jnp.array([[1.0], [2.0], [3.0]], dtype=jnp.float32)
    linear = make_linear_1x1(x.shape[0])
    y = linear(x, weight, bias)
    jax.block_until_ready(y)

    y_ref = x @ weight.T + bias
    assert y.shape == (3, 1)
    assert jnp.allclose(y, y_ref, atol=1e-6), (y, y_ref)

    # Also exercise the tiled / double-buffered / "parallel" large-M path once.
    M_big = 2 * TILE_ROWS * LANE
    x_big = jnp.linspace(-1.0, 1.0, M_big, dtype=jnp.float32).reshape(M_big, 1)
    linear_big = make_linear_1x1(M_big)
    y_big = linear_big(x_big, weight, bias)
    jax.block_until_ready(y_big)
    y_big_ref = x_big * weight[0, 0] + bias[0]
    assert y_big.shape == (M_big, 1)
    assert jnp.allclose(y_big, y_big_ref, atol=1e-6)

    print("KERNEL_OK")
</pallas_src>

<mosaic_0001>
module attributes {stable_mosaic.version = 11 : i64} {
  func.func @_linear_kernel(%arg0: memref<1x3xf32, #tpu.memory_space<vmem>>, %arg1: memref<2xf32, #tpu.memory_space<smem>>, %arg2: memref<1x3xf32, #tpu.memory_space<vmem>>) attributes {dimension_semantics = [], scalar_prefetch = 0 : i64, scratch_operands = 0 : i64, tpu.core_type = #tpu.core_type<tc>} {
    %c0 = arith.constant 0 : index
    %c0_0 = arith.constant 0 : index
    %0 = vector.load %arg0[%c0, %c0_0] : memref<1x3xf32, #tpu.memory_space<vmem>>, vector<1x3xf32>
    %c0_1 = arith.constant 0 : index
    %1 = memref.load %arg1[%c0_1] : memref<2xf32, #tpu.memory_space<smem>>
    %2 = vector.broadcast %1 : f32 to vector<1x3xf32>
    %3 = arith.mulf %0, %2 : vector<1x3xf32>
    %c1 = arith.constant 1 : index
    %4 = memref.load %arg1[%c1] : memref<2xf32, #tpu.memory_space<smem>>
    %5 = vector.broadcast %4 : f32 to vector<1x3xf32>
    %6 = arith.addf %3, %5 : vector<1x3xf32>
    %c0_2 = arith.constant 0 : index
    %c0_3 = arith.constant 0 : index
    %7 = vector.load %arg2[%c0_2, %c0_3] : memref<1x3xf32, #tpu.memory_space<vmem>>, vector<1x3xf32>
    tpu.vector_store %arg2[%c0_2, %c0_3], %6 {strides = array<i32>} : memref<1x3xf32, #tpu.memory_space<vmem>>, vector<1x3xf32>,
    return
  }
}

</mosaic_0001>

<llo_original>
// kernel: linear_pallas.1
$region0: #{linear_pallas.1}
  #allocation0 [shape = 'u32[]', space=smem, size = 0x4, offset = 0x4, fixed_abs, tag = 'smem constant byte address 0x4 - core index']
  #allocation1 [shape = 'u32[72,128]{1,0:T(1,128)}', space=vmem, size = 0x9000, scoped, tag = 'internal scratch']
  %s0 = inlined_call_operand.vmem [shape: f32[1,3], index: 0, kind: input, shape index: {}]
  %s1 = inlined_call_operand.vmem [shape: f32[2], index: 1, kind: input, shape index: {}]
  %s2 = inlined_call_operand.hbm [shape: f32[1,3], index: 2, kind: output, shape index: {}]
  %s3 = sld [smem:[#allocation0]]
  $region22: #{linear_pallas.1} parent=0
    _
  %s5 = ssub.s32 1, %s3
  %s6 = scalar_select 0, %s5, %s3
  $region1: #{linear_pallas.1} parent=0
    #allocation2 [shape = 'u8[512]{0}', space=smem, size = 0x200, scoped, tag = 'input window, operand 1, single buffered']
    #allocation3 [shape = 's32[1]{0}', space=sflag, size = 0x4, scoped, tag = 'scoped memory for linear_pallas.1']
    #allocation4 [shape = 's32[1]{0}', space=sflag, size = 0x4, scoped, tag = 'scoped memory for linear_pallas.1']
    #allocation5 [shape = 'u8[512]{0}', space=vmem, size = 0x400, scoped, tag = 'output window, operand 0, single buffered']
    %7 = vsyncpa [#allocation4], 0
    %8 = vsyncpa [#allocation3], 0
    // Predicated region
    $region2: #{linear_pallas.1} parent=1 // pred_check
      _
    $region3: #{linear_pallas.1} parent=1 // pred_check_branch
      %10 = sbr.rel (0) target = $region5
    $region4: #{linear_pallas.1} parent=1 // pred_region
      _
    $region5: #{linear_pallas.1} parent=1 // pred_fallthru
      _
    // Predicated region
    $region6: #{linear_pallas.1} parent=1 // pred_check
      _
    $region7: #{linear_pallas.1} parent=1 // pred_check_branch
      %12 = sbr.rel (0) target = $region9
    $region8: #{linear_pallas.1} parent=1 // pred_region
      %14 = vsyncadd [#allocation4], 0
      %s16 = sshll.u32 %s1, 4
      %s17 = int_to_ptr.vmem [resolvable:$true] %s16
      %19 = dma.vmem_to_smem %s17, 16, [#allocation2], [#allocation4]
    $region9: #{linear_pallas.1} parent=1 // pred_fallthru
      _
    // Predicated region
    $region10: #{linear_pallas.1} parent=1 // pred_check
      _
    $region11: #{linear_pallas.1} parent=1 // pred_check_branch
      %21 = sbr.rel (0) target = $region13
    $region12: #{linear_pallas.1} parent=1 // pred_region
      %23 = dma.done [#allocation4], 16
    $region13: #{linear_pallas.1} parent=1 // pred_fallthru
      _
    %24 = sfence
    %v25 = vld [vmem:[%s0] sm:$0x1]
    %s26 = sld [smem:[#allocation2]]
    %v27 = vstv %s26
    %v28 = vmul.f32 %v25, %v27
    %s29 = sld [smem:[#allocation2 + $0x1]]
    %v30 = vstv %s29
    %v31 = vadd.f32 %v28, %v30
    %vm32 = vcmask 16384
    %33 = vst.msk [vmem:[#allocation5] sm:$0x1] %vm32, %v31
    // Predicated region
    $region14: #{linear_pallas.1} parent=1 // pred_check
      _
    $region15: #{linear_pallas.1} parent=1 // pred_check_branch
      %35 = sbr.rel (0) target = $region17
    $region16: #{linear_pallas.1} parent=1 // pred_region
      %37 = vsyncadd [#allocation3], 0
      %s39 = sshll.u32 [#allocation5], 4
      %s40 = int_to_ptr.vmem [resolvable:$true] %s39
      %s41 = sshll.u32 %s2, 4
      %s42 = int_to_ptr.hbm [resolvable:$true] %s41
      %44 = dma.vmem_to_hbm [thread:$0]  %s40, 16, %s42, [#allocation3]
    $region17: #{linear_pallas.1} parent=1 // pred_fallthru
      _
    // Predicated region
    $region18: #{linear_pallas.1} parent=1 // pred_check
      _
    $region19: #{linear_pallas.1} parent=1 // pred_check_branch
      %46 = sbr.rel (0) target = $region21
    $region20: #{linear_pallas.1} parent=1 // pred_region
      %48 = dma.done [#allocation3], 16
    $region21: #{linear_pallas.1} parent=1 // pred_fallthru
      _
    %49 = vsyncpa [#allocation3], 1
    %50 = vsyncpa [#allocation4], 1

</llo_original>
